<compile_context>
chip_gen: v6e
topology: v6e:2x2x1
jax: 0.10.0
libtpu: 0.0.40
codegen_flags: <defaults>
</compile_context>

<pallas_src>
import numpy as np
import jax
import jax.numpy as jnp
from jax.experimental import pallas as pl
from jax.experimental.pallas import tpu as pltpu
from jax.scipy.linalg import block_diag

P = 4  # logical rows packed per lane-row


def _timefilm_kernel(tx_ref, arsel_ref, pw_ref, bp_ref, wab_ref, o_ref):
    # tx_ref   : (TM4, P + P*IN)  cols [0:P] = t of the P packed rows,
    #                             cols [P:]  = x of the P packed rows
    # arsel_ref: (P + 1, F)       row j (<P): [ar|ar] in lane segment j, else 0
    #                             row P    : phase shift [0 | pi/2] tiled P times
    # pw_ref   : (P + P*IN, O)    block-diag proj weights (t rows are zero)
    # bp_ref   : (1, O)           proj bias tiled P times
    # wab_ref  : (F, 2*O)         block-diag fused [alpha | beta] weights
    # o_ref    : (TM4, O)         O = P*E, packed lane-dense output
    F = arsel_ref.shape[-1]
    O = o_ref.shape[-1]

    # Exact f32 lane replication of the P packed t values: P broadcast-FMAs
    # against constant selector rows (VPU).  Keeps the phase f32-exact
    # independent of the MXU's f32 multi-pass behaviour.
    phase = tx_ref[:, 0:1] * arsel_ref[0:1, :] + arsel_ref[P:P + 1, :]
    for j in range(1, P):
        phase = phase + tx_ref[:, j:j + 1] * arsel_ref[j:j + 1, :]
    # cos(z) == sin(z + pi/2): one dense 128-lane sin stream, no concat.
    feats = jnp.sin(phase)                                        # (TM4, F)

    # Fused block-diagonal [alpha | beta] matmul -> lane-dense (TM4, 2*O).
    ab = jnp.dot(feats.astype(wab_ref.dtype), wab_ref[...],
                 preferred_element_type=jnp.float32)
    alpha = ab[:, :O]                                             # 256-lane aligned slice
    beta = ab[:, O:]

    # Packed projection: x replication + Wp^T contraction on the (idle) MXU.
    proj = jnp.dot(tx_ref[...], pw_ref[...],
                   preferred_element_type=jnp.float32) + bp_ref[...]

    o_ref[...] = (proj * alpha + beta).astype(o_ref.dtype)


def timefilm_modified(x, t, alpha_weights, beta_weights, ar, proj_w, proj_b,
                      *, tm=2048, matmul_dtype=jnp.float32,
                      out_dtype=jnp.float32):
    """x: (B, T, IN), t: (B, T, 1) -> (B, T, E)."""
    B, T, IN = x.shape
    H = int(np.prod(ar.shape))          # buffer registered as (1, 1, H)
    E = int(alpha_weights.shape[-1])
    N = B * T
    F = P * 2 * H                       # packed feature width (128 @ defaults)
    O = P * E                           # packed output width  (256 @ defaults)
    K = P + P * IN                      # packed [t | x] width  (8   @ defaults)

    # ---- pack P logical rows per lane-row ----------------------------------
    N4 = max(-(-N // P), 8)             # >=8 packed rows so matmul M >= 8
    Npad = N4 * P
    t_flat = t.reshape(N).astype(jnp.float32)
    x_flat = x.reshape(N, IN).astype(jnp.float32)
    if Npad != N:                       # tiny pad; sliced off below
        t_flat = jnp.pad(t_flat, (0, Npad - N))
        x_flat = jnp.pad(x_flat, ((0, Npad - N), (0, 0)))
    tx = jnp.concatenate(
        [t_flat.reshape(N4, P), x_flat.reshape(N4, P * IN)], axis=-1)  # (N4, K)

    # ---- constant operands ---------------------------------------------------
    ar_row = ar.reshape(H).astype(jnp.float32)
    ar2h = jnp.concatenate([ar_row, ar_row]).reshape(1, 2 * H)          # (1, 2H)
    shift = jnp.concatenate([jnp.zeros((H,), jnp.float32),
                             jnp.full((H,), jnp.pi / 2, jnp.float32)])  # (2H,)
    arsel = jnp.concatenate(
        [block_diag(*([ar2h] * P)),                                     # (P, F)
         jnp.tile(shift, P).reshape(1, F)], axis=0)                     # (P+1, F)

    wp = proj_w.reshape(E, IN).T.astype(jnp.float32)                    # (IN, E)
    pw = jnp.concatenate(
        [jnp.zeros((P, O), jnp.float32),                                # t rows -> 0
         block_diag(*([wp] * P))], axis=0)                              # (K, O)
    bp = jnp.tile(proj_b.reshape(E).astype(jnp.float32), P).reshape(1, O)

    wa = alpha_weights.astype(jnp.float32)
    wb = beta_weights.astype(jnp.float32)
    wab = jnp.concatenate([block_diag(*([wa] * P)),
                           block_diag(*([wb] * P))],
                          axis=-1).astype(matmul_dtype)                 # (F, 2*O)

    # ---- grid / tiling -------------------------------------------------------
    tmp_req = max(8, (int(tm) // P // 8) * 8)      # requested packed-row tile
    half = ((-(-N4 // 2) + 7) // 8) * 8            # >=2 steps for v7x dual-TC
    tmp = min(tmp_req, half)
    if tmp >= N4:
        tmp = N4                                   # single (full) block
    grid0 = -(-N4 // tmp)                          # ragged boundary block is masked

    out = pl.pallas_call(
        _timefilm_kernel,
        out_shape=jax.ShapeDtypeStruct((N4, O), out_dtype),
        grid_spec=pltpu.PrefetchScalarGridSpec(
            num_scalar_prefetch=0,
            grid=(grid0,),
            in_specs=[
                pl.BlockSpec((tmp, K), lambda i: (i, 0)),     # packed [t | x]
                pl.BlockSpec((P + 1, F), lambda i: (0, 0)),   # phase selectors (resident)
                pl.BlockSpec((K, O), lambda i: (0, 0)),       # proj selector (resident)
                pl.BlockSpec((1, O), lambda i: (0, 0)),       # proj bias (resident)
                pl.BlockSpec((F, 2 * O), lambda i: (0, 0)),   # fused alpha|beta (resident)
            ],
            out_specs=pl.BlockSpec((tmp, O), lambda i: (i, 0)),
        ),
        compiler_params=pltpu.CompilerParams(
            dimension_semantics=("parallel",)),
    )(tx, arsel, pw, bp, wab)

    out = out.reshape(Npad, E)           # free row-major view of the packed slab
    if Npad != N:
        out = out[:N]
    return out.reshape(B, T, E)


def timefilm_reference(x, t, alpha_weights, beta_weights, ar, proj_w, proj_b):
    # Pure-JAX reference mirroring the PyTorch forward.
    H = int(np.prod(ar.shape))
    phase = ar.reshape(1, 1, H) * t                                     # (B, T, H)
    feats = jnp.concatenate([jnp.sin(phase), jnp.cos(phase)], axis=-1)  # (B, T, 2H)
    alpha = feats @ alpha_weights
    beta = feats @ beta_weights
    proj = x @ proj_w.T + proj_b
    return proj * alpha + beta


if __name__ == "__main__":
    # Module hyperparameters (defaults from __init__)
    n_harmonics = 16
    embedding_size = 64
    Tmax = 1000.0
    input_size = 1

    key = jax.random.PRNGKey(0)
    k1, k2, k3, k4 = jax.random.split(key, 4)

    alpha_weights = jax.random.normal(k1, (2 * n_harmonics, embedding_size), jnp.float32)
    beta_weights = jax.random.normal(k2, (2 * n_harmonics, embedding_size), jnp.float32)
    proj_w = jax.random.normal(k3, (embedding_size, input_size), jnp.float32) * 0.1
    proj_b = jax.random.normal(k4, (embedding_size,), jnp.float32) * 0.1
    ar = (2.0 * jnp.pi / Tmax) * jnp.arange(n_harmonics, dtype=jnp.float32)
    ar = ar.reshape(1, 1, n_harmonics)   # same shape as the registered buffer

    def check(B, T, rtol, atol, **kw):
        kx, kt = jax.random.split(jax.random.fold_in(key, B * 1000 + T), 2)
        x = jax.random.normal(kx, (B, T, input_size), jnp.float32)
        t = jax.random.uniform(kt, (B, T, 1), jnp.float32, minval=0.0, maxval=Tmax)
        ref = timefilm_reference(x, t, alpha_weights, beta_weights, ar, proj_w, proj_b)
        out = timefilm_modified(x, t, alpha_weights, beta_weights, ar, proj_w, proj_b, **kw)
        out = jax.block_until_ready(out)
        np.testing.assert_allclose(np.asarray(out.astype(jnp.float32)),
                                   np.asarray(ref), rtol=rtol, atol=atol)

    # Default (f32 matmul operands, f32 output).  Tolerance covers the
    # cos(z)=sin(z+pi/2) f32 phase rounding and MXU f32 multi-pass rounding.
    check(2, 8, rtol=2e-3, atol=5e-3)      # small: single packed block
    check(4, 300, rtol=2e-3, atol=5e-3)    # multi-block grid + ragged boundary block
    check(2, 7, rtol=2e-3, atol=5e-3)      # N % 4 != 0 padding path
    # Opt-in bf16 MXU operands + bf16 output (looser tolerance by construction).
    check(4, 300, rtol=5e-2, atol=5e-1,
          matmul_dtype=jnp.bfloat16, out_dtype=jnp.bfloat16)

    print("KERNEL_OK")
</pallas_src>

<mosaic_0001>
module attributes {stable_mosaic.version = 11 : i64} {
  func.func @_timefilm_kernel(%arg0: i32, %arg1: memref<8x8xf32, #tpu.memory_space<vmem>>, %arg2: memref<5x128xf32, #tpu.memory_space<vmem>>, %arg3: memref<8x256xf32, #tpu.memory_space<vmem>>, %arg4: memref<1x256xf32, #tpu.memory_space<vmem>>, %arg5: memref<128x512xf32, #tpu.memory_space<vmem>>, %arg6: memref<8x256xf32, #tpu.memory_space<vmem>>) attributes {dimension_semantics = [#tpu.dimension_semantics<parallel>], iteration_bounds = array<i64: 1>, scalar_prefetch = 0 : i64, scratch_operands = 0 : i64, tpu.core_type = #tpu.core_type<tc>, window_params = [{transform_indices = @transform_0, window_bounds = array<i64: 8, 8>}, {pipeline_mode = #tpu.pipeline_mode<synchronous>, transform_indices = @transform_1, window_bounds = array<i64: 5, 128>}, {pipeline_mode = #tpu.pipeline_mode<synchronous>, transform_indices = @transform_2, window_bounds = array<i64: 8, 256>}, {pipeline_mode = #tpu.pipeline_mode<synchronous>, transform_indices = @transform_3, window_bounds = array<i64: 1, 256>}, {pipeline_mode = #tpu.pipeline_mode<synchronous>, transform_indices = @transform_4, window_bounds = array<i64: 128, 512>}, {transform_indices = @transform_5, window_bounds = array<i64: 8, 256>}]} {
    %c0 = arith.constant 0 : index
    %c0_0 = arith.constant 0 : index
    %0 = vector.load %arg1[%c0, %c0_0] : memref<8x8xf32, #tpu.memory_space<vmem>>, vector<8x1xf32>
    %c0_1 = arith.constant 0 : index
    %c0_2 = arith.constant 0 : index
    %1 = vector.load %arg2[%c0_1, %c0_2] : memref<5x128xf32, #tpu.memory_space<vmem>>, vector<1x128xf32>
    %2 = vector.broadcast %0 : vector<8x1xf32> to vector<8x128xf32>
    %3 = vector.broadcast %1 : vector<1x128xf32> to vector<8x128xf32>
    %4 = arith.mulf %2, %3 : vector<8x128xf32>
    %c4 = arith.constant 4 : index
    %c0_3 = arith.constant 0 : index
    %5 = vector.load %arg2[%c4, %c0_3] : memref<5x128xf32, #tpu.memory_space<vmem>>, vector<1x128xf32>
    %6 = vector.broadcast %5 : vector<1x128xf32> to vector<8x128xf32>
    %7 = arith.addf %4, %6 : vector<8x128xf32>
    %c0_4 = arith.constant 0 : index
    %c1 = arith.constant 1 : index
    %8 = vector.load %arg1[%c0_4, %c1] : memref<8x8xf32, #tpu.memory_space<vmem>>, vector<8x1xf32>
    %c1_5 = arith.constant 1 : index
    %c0_6 = arith.constant 0 : index
    %9 = vector.load %arg2[%c1_5, %c0_6] : memref<5x128xf32, #tpu.memory_space<vmem>>, vector<1x128xf32>
    %10 = vector.broadcast %8 : vector<8x1xf32> to vector<8x128xf32>
    %11 = vector.broadcast %9 : vector<1x128xf32> to vector<8x128xf32>
    %12 = arith.mulf %10, %11 : vector<8x128xf32>
    %13 = arith.addf %7, %12 : vector<8x128xf32>
    %c0_7 = arith.constant 0 : index
    %c2 = arith.constant 2 : index
    %14 = vector.load %arg1[%c0_7, %c2] : memref<8x8xf32, #tpu.memory_space<vmem>>, vector<8x1xf32>
    %c2_8 = arith.constant 2 : index
    %c0_9 = arith.constant 0 : index
    %15 = vector.load %arg2[%c2_8, %c0_9] : memref<5x128xf32, #tpu.memory_space<vmem>>, vector<1x128xf32>
    %16 = vector.broadcast %14 : vector<8x1xf32> to vector<8x128xf32>
    %17 = vector.broadcast %15 : vector<1x128xf32> to vector<8x128xf32>
    %18 = arith.mulf %16, %17 : vector<8x128xf32>
    %19 = arith.addf %13, %18 : vector<8x128xf32>
    %c0_10 = arith.constant 0 : index
    %c3 = arith.constant 3 : index
    %20 = vector.load %arg1[%c0_10, %c3] : memref<8x8xf32, #tpu.memory_space<vmem>>, vector<8x1xf32>
    %c3_11 = arith.constant 3 : index
    %c0_12 = arith.constant 0 : index
    %21 = vector.load %arg2[%c3_11, %c0_12] : memref<5x128xf32, #tpu.memory_space<vmem>>, vector<1x128xf32>
    %22 = vector.broadcast %20 : vector<8x1xf32> to vector<8x128xf32>
    %23 = vector.broadcast %21 : vector<1x128xf32> to vector<8x128xf32>
    %24 = arith.mulf %22, %23 : vector<8x128xf32>
    %25 = arith.addf %19, %24 : vector<8x128xf32>
    %26 = math.sin %25 : vector<8x128xf32>
    %c0_13 = arith.constant 0 : index
    %c0_14 = arith.constant 0 : index
    %27 = vector.load %arg5[%c0_13, %c0_14] : memref<128x512xf32, #tpu.memory_space<vmem>>, vector<128x512xf32>
    %cst = arith.constant dense<0.000000e+00> : vector<8x512xf32>
    %28 = tpu.matmul %26, %27, %cst {dimension_numbers = #tpu.dot_dimension_numbers<[1], [0], [0], [1], [0, 0, 1, 1], [], []>} : vector<8x128xf32>, vector<128x512xf32>, vector<8x512xf32> -> vector<8x512xf32>
    %29 = vector.extract_strided_slice %28 {offsets = [0, 0], sizes = [8, 256], strides = [1, 1]} : vector<8x512xf32> to vector<8x256xf32>
    %30 = vector.extract_strided_slice %28 {offsets = [0, 256], sizes = [8, 256], strides = [1, 1]} : vector<8x512xf32> to vector<8x256xf32>
    %c0_15 = arith.constant 0 : index
    %c0_16 = arith.constant 0 : index
    %31 = vector.load %arg1[%c0_15, %c0_16] : memref<8x8xf32, #tpu.memory_space<vmem>>, vector<8x8xf32>
    %c0_17 = arith.constant 0 : index
    %c0_18 = arith.constant 0 : index
    %32 = vector.load %arg3[%c0_17, %c0_18] : memref<8x256xf32, #tpu.memory_space<vmem>>, vector<8x256xf32>
    %cst_19 = arith.constant dense<0.000000e+00> : vector<8x256xf32>
    %33 = tpu.matmul %31, %32, %cst_19 {dimension_numbers = #tpu.dot_dimension_numbers<[1], [0], [0], [1], [0, 0, 1, 1], [], []>} : vector<8x8xf32>, vector<8x256xf32>, vector<8x256xf32> -> vector<8x256xf32>
    %c0_20 = arith.constant 0 : index
    %c0_21 = arith.constant 0 : index
    %34 = vector.load %arg4[%c0_20, %c0_21] : memref<1x256xf32, #tpu.memory_space<vmem>>, vector<1x256xf32>
    %35 = vector.broadcast %34 : vector<1x256xf32> to vector<8x256xf32>
    %36 = arith.addf %33, %35 : vector<8x256xf32>
    %37 = arith.mulf %36, %29 : vector<8x256xf32>
    %38 = arith.addf %37, %30 : vector<8x256xf32>
    %c0_22 = arith.constant 0 : index
    %c0_23 = arith.constant 0 : index
    %39 = vector.load %arg6[%c0_22, %c0_23] : memref<8x256xf32, #tpu.memory_space<vmem>>, vector<8x256xf32>
    tpu.vector_store %arg6[%c0_22, %c0_23], %38 {strides = array<i32>} : memref<8x256xf32, #tpu.memory_space<vmem>>, vector<8x256xf32>,
    return
  }
  func.func @transform_0(%arg0: i32) -> (i32, i32) {
    %c0_i32 = arith.constant 0 : i32
    %c0_i32_0 = arith.constant 0 : i32
    return %arg0, %c0_i32 : i32, i32
  }
  func.func @transform_1(%arg0: i32) -> (i32, i32) {
    %c0_i32 = arith.constant 0 : i32
    %c0_i32_0 = arith.constant 0 : i32
    %c0_i32_1 = arith.constant 0 : i32
    return %c0_i32, %c0_i32_0 : i32, i32
  }
  func.func @transform_2(%arg0: i32) -> (i32, i32) {
    %c0_i32 = arith.constant 0 : i32
    %c0_i32_0 = arith.constant 0 : i32
    %c0_i32_1 = arith.constant 0 : i32
    return %c0_i32, %c0_i32_0 : i32, i32
  }
  func.func @transform_3(%arg0: i32) -> (i32, i32) {
    %c0_i32 = arith.constant 0 : i32
    %c0_i32_0 = arith.constant 0 : i32
    %c0_i32_1 = arith.constant 0 : i32
    return %c0_i32, %c0_i32_0 : i32, i32
  }
  func.func @transform_4(%arg0: i32) -> (i32, i32) {
    %c0_i32 = arith.constant 0 : i32
    %c0_i32_0 = arith.constant 0 : i32
    %c0_i32_1 = arith.constant 0 : i32
    return %c0_i32, %c0_i32_0 : i32, i32
  }
  func.func @transform_5(%arg0: i32) -> (i32, i32) {
    %c0_i32 = arith.constant 0 : i32
    %c0_i32_0 = arith.constant 0 : i32
    return %arg0, %c0_i32 : i32, i32
  }
}

</mosaic_0001>

<llo_original>
// kernel: tpu_custom_call.1
$region0: #{tpu_custom_call.1}
  #allocation0 [shape = 'u32[]', space=smem, size = 0x4, offset = 0x4, fixed_abs, tag = 'smem constant byte address 0x4 - core index']
  #allocation1 [shape = 'u32[144,128]{1,0:T(1,128)}', space=vmem, size = 0x12000, scoped, tag = 'internal scratch']
  %s0 = inlined_call_operand.hbm [shape: f32[8,8], index: 0, kind: input, shape index: {}]
  %s1 = inlined_call_operand.hbm [shape: f32[5,128], index: 1, kind: input, shape index: {}]
  %s2 = inlined_call_operand.hbm [shape: f32[8,256], index: 2, kind: input, shape index: {}]
  %s3 = inlined_call_operand.vmem [shape: f32[1,256], index: 3, kind: input, shape index: {}]
  %s4 = inlined_call_operand.hbm [shape: f32[128,512], index: 4, kind: input, shape index: {}]
  %s5 = inlined_call_operand.hbm [shape: f32[8,256], index: 5, kind: output, shape index: {}]
  %s6 = sld [smem:[#allocation0]]
  $region46: #{tpu_custom_call.1} parent=0
    _
  %s8 = ssub.s32 1, %s6
  %s9 = scalar_select 0, %s8, %s6
  $region1: #{tpu_custom_call.1} parent=0
    #allocation2 [shape = 'u8[4096]{0}', space=vmem, size = 0x1000, scoped, tag = 'input window, operand 0, single buffered']
    #allocation3 [shape = 's32[1]{0}', space=sflag, size = 0x4, scoped, tag = 'scoped memory for tpu_custom_call.1']
    #allocation4 [shape = 's32[1]{0}', space=sflag, size = 0x4, scoped, tag = 'scoped memory for tpu_custom_call.1']
    #allocation5 [shape = 'u8[4096]{0}', space=vmem, size = 0x1000, scoped, tag = 'input window, operand 1, single buffered']
    #allocation6 [shape = 's32[1]{0}', space=sflag, size = 0x4, scoped, tag = 'scoped memory for tpu_custom_call.1']
    #allocation7 [shape = 'u8[8192]{0}', space=vmem, size = 0x2000, scoped, tag = 'input window, operand 2, single buffered']
    #allocation8 [shape = 'u8[262144]{0}', space=vmem, size = 0x40000, scoped, tag = 'input window, operand 4, single buffered']
    #allocation9 [shape = 's32[1]{0}', space=sflag, size = 0x4, scoped, tag = 'scoped memory for tpu_custom_call.1']
    #allocation10 [shape = 'u8[8192]{0}', space=vmem, size = 0x2000, scoped, tag = 'output window, operand 0, single buffered']
    %10 = vsyncpa [#allocation3], 0
    %11 = vsyncpa [#allocation6], 0
    %12 = vsyncpa [#allocation9], 0
    %13 = vsyncpa [#allocation4], 0
    // Predicated region
    $region2: #{tpu_custom_call.1} parent=1 // pred_check
      _
    $region3: #{tpu_custom_call.1} parent=1 // pred_check_branch
      %15 = sbr.rel (0) target = $region5
    $region4: #{tpu_custom_call.1} parent=1 // pred_region
      %s17 = ssub.s32 128, 128
      %18 = vsyncadd [#allocation3], %s17
      %s20 = sshll.u32 [#allocation2], 4
      %s21 = int_to_ptr.vmem [resolvable:$true] %s20
      %23 = dma.hbm_to_vmem [thread:$0]  %s0, 128, %s21, [#allocation3]
    $region5: #{tpu_custom_call.1} parent=1 // pred_fallthru
      _
    // Predicated region
    $region6: #{tpu_custom_call.1} parent=1 // pred_check
      _
    $region7: #{tpu_custom_call.1} parent=1 // pred_check_branch
      %25 = sbr.rel (0) target = $region9
    $region8: #{tpu_custom_call.1} parent=1 // pred_region
      %s27 = ssub.s32 128, 128
      %28 = vsyncadd [#allocation6], %s27
      %s30 = sshll.u32 [#allocation5], 4
      %s31 = int_to_ptr.vmem [resolvable:$true] %s30
      %33 = dma.hbm_to_vmem [thread:$0]  %s1, 128, %s31, [#allocation6]
    $region9: #{tpu_custom_call.1} parent=1 // pred_fallthru
      _
    // Predicated region
    $region10: #{tpu_custom_call.1} parent=1 // pred_check
      _
    $region11: #{tpu_custom_call.1} parent=1 // pred_check_branch
      %35 = sbr.rel (0) target = $region13
    $region12: #{tpu_custom_call.1} parent=1 // pred_region
      %s37 = ssub.s32 256, 256
      %38 = vsyncadd [#allocation6], %s37
      %s40 = sshll.u32 [#allocation7], 4
      %s41 = int_to_ptr.vmem [resolvable:$true] %s40
      %43 = dma.hbm_to_vmem [thread:$0]  %s2, 256, %s41, [#allocation6]
    $region13: #{tpu_custom_call.1} parent=1 // pred_fallthru
      _
    // Predicated region
    $region14: #{tpu_custom_call.1} parent=1 // pred_check
      _
    $region15: #{tpu_custom_call.1} parent=1 // pred_check_branch
      %45 = sbr.rel (0) target = $region17
    $region16: #{tpu_custom_call.1} parent=1 // pred_region
      _
    $region17: #{tpu_custom_call.1} parent=1 // pred_fallthru
      _
    // Predicated region
    $region18: #{tpu_custom_call.1} parent=1 // pred_check
      _
    $region19: #{tpu_custom_call.1} parent=1 // pred_check_branch
      %47 = sbr.rel (0) target = $region21
    $region20: #{tpu_custom_call.1} parent=1 // pred_region
      %s49 = ssub.s32 8192, 8192
      %50 = vsyncadd [#allocation9], %s49
      %s51 = sshll.u32 [#allocation8], 4
      %s52 = int_to_ptr.vmem [resolvable:$true] %s51
      %57 = dma.hbm_to_vmem [thread:$0]  %s4, 8192, %s52, [#allocation9], 512, 512, 32
    $region21: #{tpu_custom_call.1} parent=1 // pred_fallthru
      _
    // Predicated region
    $region22: #{tpu_custom_call.1} parent=1 // pred_check
      _
    $region23: #{tpu_custom_call.1} parent=1 // pred_check_branch
      %59 = sbr.rel (0) target = $region25
    $region24: #{tpu_custom_call.1} parent=1 // pred_region
      %60 = dma.done [#allocation3], 128
    $region25: #{tpu_custom_call.1} parent=1 // pred_fallthru
      _
    // Predicated region
    $region26: #{tpu_custom_call.1} parent=1 // pred_check
      _
    $region27: #{tpu_custom_call.1} parent=1 // pred_check_branch
      %62 = sbr.rel (0) target = $region29
    $region28: #{tpu_custom_call.1} parent=1 // pred_region
      %63 = dma.done [#allocation6], 128
    $region29: #{tpu_custom_call.1} parent=1 // pred_fallthru
      _
    // Predicated region
    $region30: #{tpu_custom_call.1} parent=1 // pred_check
      _
    $region31: #{tpu_custom_call.1} parent=1 // pred_check_branch
      %65 = sbr.rel (0) target = $region33
    $region32: #{tpu_custom_call.1} parent=1 // pred_region
      %66 = dma.done [#allocation6], 256
    $region33: #{tpu_custom_call.1} parent=1 // pred_fallthru
      _
    // Predicated region
    $region34: #{tpu_custom_call.1} parent=1 // pred_check
      _
    $region35: #{tpu_custom_call.1} parent=1 // pred_check_branch
      %68 = sbr.rel (0) target = $region37
    $region36: #{tpu_custom_call.1} parent=1 // pred_region
      %69 = dma.done [#allocation9], 8192
    $region37: #{tpu_custom_call.1} parent=1 // pred_fallthru
      _
    %v70 = vld [vmem:[#allocation2] sm:$0xff]
    %v71 = vld [vmem:[#allocation5] sm:$0x1]
    %73 = vset.pattern.permute.xlu0 0
    %74 = vperm.xlu0 %73, %v70
    %v75 = vpop.permute.xlu0 %74
    %v77 = vlaneseq
    %v78 = vshrl.u32 %v77, 7
    %v79 = vsub.s32 0, %v78
    %v80 = vrot.slane %v71, %v79
    %v81 = vmul.f32 %v75, %v80
    %v82 = vld [vmem:[#allocation5 + $0x4] sm:$0x1]
    %v83 = vlaneseq
    %v84 = vshrl.u32 %v83, 7
    %v85 = vsub.s32 0, %v84
    %v86 = vrot.slane %v82, %v85
    %v87 = vadd.f32 %v81, %v86
    %v88 = vld [vmem:[#allocation5 + $0x1] sm:$0x1]
    %89 = vset.pattern.permute.xlu0 1
    %90 = vperm.xlu0 %89, %v70
    %v91 = vpop.permute.xlu0 %90
    %v93 = vlaneseq
    %v94 = vshrl.u32 %v93, 7
    %v95 = vsub.s32 0, %v94
    %v96 = vrot.slane %v88, %v95
    %v97 = vmul.f32 %v91, %v96
    %v98 = vadd.f32 %v87, %v97
    %v99 = vld [vmem:[#allocation5 + $0x2] sm:$0x1]
    %100 = vset.pattern.permute.xlu0 2
    %101 = vperm.xlu0 %100, %v70
    %v102 = vpop.permute.xlu0 %101
    %v104 = vlaneseq
    %v105 = vshrl.u32 %v104, 7
    %v106 = vsub.s32 0, %v105
    %v107 = vrot.slane %v99, %v106
    %v108 = vmul.f32 %v102, %v107
    %v109 = vadd.f32 %v98, %v108
    %v110 = vld [vmem:[#allocation5 + $0x3] sm:$0x1]
    %111 = vset.pattern.permute.xlu0 3
    %112 = vperm.xlu0 %111, %v70
    %v113 = vpop.permute.xlu0 %112
    %v115 = vlaneseq
    %v116 = vshrl.u32 %v115, 7
    %v117 = vsub.s32 0, %v116
    %v118 = vrot.slane %v110, %v117
    %v119 = vmul.f32 %v113, %v118
    %v120 = vadd.f32 %v109, %v119
    %v121 = vand.u32 2147483647, %v120
    %vm122 = vcmp.le.f32.partialorder %v121, 0.7853982
    %vm123 = vcmp.lt.s32.totalorder %v120, 0
    %v124 = vand.u32 %v120, 2139095040
    %v125 = vshrl.u32 %v124, 23
    %v126 = vsub.s32 %v125, 127
    %v127 = vand.u32 2147483647, %v120
    %v128 = vand.u32 %v127, 8388607
    %v129 = vor.u32 %v128, 8388608
    %v130 = vsub.s32 0, %v129
    %v131 = vadd.s32 %v126, 1
    %vm132 = vcmp.gt.s32.totalorder %v131, 0
    %v133 = vsel %vm132, %v131, 0
    %v134 = vshrl.u32 %v133, 5
    %v135 = vand.u32 %v133, 31
    %v136 = vsub.s32 32, %v135
    %v137 = vshrl.u32 683565275, %v136
    %v138 = vshll.u32 683565275, %v135
    %v139 = vshrl.u32 2475754826, %v136
    %v140 = vor.u32 %v138, %v139
    %v141 = vshll.u32 2475754826, %v135
    %v142 = vshrl.u32 2131351028, %v136
    %v143 = vor.u32 %v141, %v142
    %v144 = vshll.u32 2131351028, %v135
    %v145 = vshrl.u32 2102212464, %v136
    %v146 = vor.u32 %v144, %v145
    %v147 = vshll.u32 2102212464, %v135
    %v148 = vshrl.u32 920167782, %v136
    %v149 = vor.u32 %v147, %v148
    %v150 = vshll.u32 920167782, %v135
    %v151 = vshrl.u32 1326507024, %v136
    %v152 = vor.u32 %v150, %v151
    %vm153 = vcmp.lt.s32.totalorder %v134, 1
    %vm154 = vcmp.lt.s32.totalorder %v134, 2
    %vm155 = vcmp.lt.s32.totalorder %v134, 3
    %vm156 = vcmp.lt.s32.totalorder %v134, 4
    %v157 = vsel %vm153, %v137, %v140
    %v158 = vsel %vm156, %v146, 2102212464
    %v159 = vsel %vm155, %v143, %v158
    %v160 = vsel %vm154, %v157, %v159
    %v161 = vsel %vm153, %v140, %v143
    %v162 = vsel %vm156, %v149, 920167782
    %v163 = vsel %vm155, %v146, %v162
    %v164 = vsel %vm154, %v161, %v163
    %v165 = vsel %vm153, %v143, %v146
    %v166 = vsel %vm156, %v152, 1326507024
    %v167 = vsel %vm155, %v149, %v166
    %v168 = vsel %vm154, %v165, %v167
    %v169 = vshll.u32 %v129, 8
    %v170 = vmul.u32.u64.compose %v169, %v168
    %v171 = vextract.low.u32 %v170
    %v172 = vextract.high.u32 %v170
    %v173 = vmul.u32.u64.compose %v169, %v164
    %v174 = vextract.low.u32 %v173
    %v175 = vextract.high.u32 %v173
    %v176 = vmul.u32 %v169, %v160
    %v177 = vadd.s32 %v172, %v174
    %vm178 = vc.u32 %v172, %v174
    %v179 = vadd.s32 %v175, 1
    %v180 = vsel %vm178, %v179, %v175
    %v181 = vadd.s32 %v176, %v180
    %v182 = vadd.s32 %v181, 536870912
    %v183 = vshrl.u32 %v182, 30
    %v184 = vshll.u32 %v183, 30
    %v185 = vsub.s32 %v181, %v184
    %vm186 = vcmp.lt.s32.totalorder %v185, 0
    %v187 = vsub.s32 0, %v185
    %v188 = vsel %vm186, %v187, %v185
    %v189 = vclz %v188
    %v190 = vsub.s32 %v189, 2
    %vm191 = vcmp.gt.s32.totalorder 0, %v190
    %v192 = vsel %vm191, 0, %v190
    %v193 = vsub.s32 32, %v192
    %v194 = vshll.u32 %v185, %v192
    %v195 = vshrl.u32 %v177, %v193
    %v196 = vor.u32 %v194, %v195
    %v197 = vsub.s32 4294967266, %v192
    %v198 = vadd.s32 %v197, 127
    %v199 = vshll.u32 %v198, 23
    %v200 = vor.u32 4788187, %v199
    %v201 = vand.u32 2147483647, %v200
    %v203 = vcvt.s32.f32 %v196
    %v204 = vmul.f32 %v203, %v201
    %v205 = vxor.u32 %v204, 2147483648
    %v206 = vsel %vm123, %v205, %v204
    %v207 = vsub.s32 4, %v183
    %v208 = vsel %vm123, %v207, %v183
    %v209 = vsel %vm122, %v120, %v206
    %v210 = vsel %vm122, 0, %v208
    %v211 = vcosq.f32.pop %v209
    %v212 = vsinq.f32.pop %v209
    %vm213 = vweird.f32 %v120
    %v214 = vadd.s32 %v210, 3
    %v215 = vand.u32 %v214, 3
    %vm216 = vcmp.lt.s32.totalorder %v215, 2
    %vm217 = vcmp.eq.s32.totalorder %v215, 0
    %v218 = vxor.u32 %v212, 2147483648
    %v219 = vsel %vm217, %v211, %v218
    %vm220 = vcmp.eq.s32.totalorder %v215, 2
    %v221 = vxor.u32 %v211, 2147483648
    %v222 = vsel %vm220, %v221, %v212
    %v223 = vsel %vm216, %v219, %v222
    %v224 = vsel %vm213, nan, %v223
    %v225 = vld [vmem:[#allocation8] sm:$0xff]
    %v226 = vld [vmem:[#allocation8 + $0x8] sm:$0xff]
    %v227 = vld [vmem:[#allocation8 + $0x10] sm:$0xff]
    %v228 = vld [vmem:[#allocation8 + $0x18] sm:$0xff]
    %v229 = vld [vmem:[#allocation8 + $0x20] sm:$0xff]
    %v230 = vld [vmem:[#allocation8 + $0x28] sm:$0xff]
    %v231 = vld [vmem:[#allocation8 + $0x30] sm:$0xff]
    %v232 = vld [vmem:[#allocation8 + $0x38] sm:$0xff]
    %v233 = vld [vmem:[#allocation8 + $0x40] sm:$0xff]
    %v234 = vld [vmem:[#allocation8 + $0x48] sm:$0xff]
    %v235 = vld [vmem:[#allocation8 + $0x50] sm:$0xff]
    %v236 = vld [vmem:[#allocation8 + $0x58] sm:$0xff]
    %v237 = vld [vmem:[#allocation8 + $0x60] sm:$0xff]
    %v238 = vld [vmem:[#allocation8 + $0x68] sm:$0xff]
    %v239 = vld [vmem:[#allocation8 + $0x70] sm:$0xff]
    %v240 = vld [vmem:[#allocation8 + $0x78] sm:$0xff]
    %v241 = vld [vmem:[#allocation8 + $0x80] sm:$0xff]
    %v242 = vld [vmem:[#allocation8 + $0x88] sm:$0xff]
    %v243 = vld [vmem:[#allocation8 + $0x90] sm:$0xff]
    %v244 = vld [vmem:[#allocation8 + $0x98] sm:$0xff]
    %v245 = vld [vmem:[#allocation8 + $0xa0] sm:$0xff]
    %v246 = vld [vmem:[#allocation8 + $0xa8] sm:$0xff]
    %v247 = vld [vmem:[#allocation8 + $0xb0] sm:$0xff]
    %v248 = vld [vmem:[#allocation8 + $0xb8] sm:$0xff]
    %v249 = vld [vmem:[#allocation8 + $0xc0] sm:$0xff]
    %v250 = vld [vmem:[#allocation8 + $0xc8] sm:$0xff]
    %v251 = vld [vmem:[#allocation8 + $0xd0] sm:$0xff]
    %v252 = vld [vmem:[#allocation8 + $0xd8] sm:$0xff]
    %v253 = vld [vmem:[#allocation8 + $0xe0] sm:$0xff]
    %v254 = vld [vmem:[#allocation8 + $0xe8] sm:$0xff]
    %v255 = vld [vmem:[#allocation8 + $0xf0] sm:$0xff]
    %v256 = vld [vmem:[#allocation8 + $0xf8] sm:$0xff]
    %v257 = vld [vmem:[#allocation8 + $0x100] sm:$0xff]
    %v258 = vld [vmem:[#allocation8 + $0x108] sm:$0xff]
    %v259 = vld [vmem:[#allocation8 + $0x110] sm:$0xff]
    %v260 = vld [vmem:[#allocation8 + $0x118] sm:$0xff]
    %v261 = vld [vmem:[#allocation8 + $0x120] sm:$0xff]
    %v262 = vld [vmem:[#allocation8 + $0x128] sm:$0xff]
    %v263 = vld [vmem:[#allocation8 + $0x130] sm:$0xff]
    %v264 = vld [vmem:[#allocation8 + $0x138] sm:$0xff]
    %v265 = vld [vmem:[#allocation8 + $0x140] sm:$0xff]
    %v266 = vld [vmem:[#allocation8 + $0x148] sm:$0xff]
    %v267 = vld [vmem:[#allocation8 + $0x150] sm:$0xff]
    %v268 = vld [vmem:[#allocation8 + $0x158] sm:$0xff]
    %v269 = vld [vmem:[#allocation8 + $0x160] sm:$0xff]
    %v270 = vld [vmem:[#allocation8 + $0x168] sm:$0xff]
    %v271 = vld [vmem:[#allocation8 + $0x170] sm:$0xff]
    %v272 = vld [vmem:[#allocation8 + $0x178] sm:$0xff]
    %v273 = vld [vmem:[#allocation8 + $0x180] sm:$0xff]
    %v274 = vld [vmem:[#allocation8 + $0x188] sm:$0xff]
    %v275 = vld [vmem:[#allocation8 + $0x190] sm:$0xff]
    %v276 = vld [vmem:[#allocation8 + $0x198] sm:$0xff]
    %v277 = vld [vmem:[#allocation8 + $0x1a0] sm:$0xff]
    %v278 = vld [vmem:[#allocation8 + $0x1a8] sm:$0xff]
    %v279 = vld [vmem:[#allocation8 + $0x1b0] sm:$0xff]
    %v280 = vld [vmem:[#allocation8 + $0x1b8] sm:$0xff]
    %v281 = vld [vmem:[#allocation8 + $0x1c0] sm:$0xff]
    %v282 = vld [vmem:[#allocation8 + $0x1c8] sm:$0xff]
    %v283 = vld [vmem:[#allocation8 + $0x1d0] sm:$0xff]
    %v284 = vld [vmem:[#allocation8 + $0x1d8] sm:$0xff]
    %v285 = vld [vmem:[#allocation8 + $0x1e0] sm:$0xff]
    %v286 = vld [vmem:[#allocation8 + $0x1e8] sm:$0xff]
    %v287 = vld [vmem:[#allocation8 + $0x1f0] sm:$0xff]
    %v288 = vld [vmem:[#allocation8 + $0x1f8] sm:$0xff]
    %289 = vmatprep.subr.mxu0 %v286
    %290 = vmatpush1.msra.mxu0 %v285
    %291 = vmatprep.subr.mxu0 %v282
    %292 = vmatpush1.msra.mxu0 %v281
    %293 = vmatprep.subr.mxu0 %v278
    %294 = vmatpush1.msra.mxu0 %v277
    %295 = vmatprep.subr.mxu0 %v274
    %296 = vmatpush1.msra.mxu0 %v273
    %297 = vmatprep.subr.mxu0 %v270
    %298 = vmatpush1.msra.mxu0 %v269
    %299 = vmatprep.subr.mxu0 %v266
    %300 = vmatpush1.msra.mxu0 %v265
    %301 = vmatprep.subr.mxu0 %v262
    %302 = vmatpush1.msra.mxu0 %v261
    %303 = vmatprep.subr.mxu0 %v258
    %304 = vmatpush1.msra.mxu0 %v257
    %305 = vmatprep.subr.mxu0 %v254
    %306 = vmatpush1.msra.mxu0 %v253
    %307 = vmatprep.subr.mxu0 %v250
    %308 = vmatpush1.msra.mxu0 %v249
    %309 = vmatprep.subr.mxu0 %v246
    %310 = vmatpush1.msra.mxu0 %v245
    %311 = vmatprep.subr.mxu0 %v242
    %312 = vmatpush1.msra.mxu0 %v241
    %313 = vmatprep.subr.mxu0 %v238
    %314 = vmatpush1.msra.mxu0 %v237
    %315 = vmatprep.subr.mxu0 %v234
    %316 = vmatpush1.msra.mxu0 %v233
    %317 = vmatprep.subr.mxu0 %v230
    %318 = vmatpush1.msra.mxu0 %v229
    %319 = vmatprep.subr.mxu0 %v226
    %320 = vmatpush1.msra.mxu0 %v225
    %321 = vmatprep.subr.mxu0 0.0
    %322 = vmatpush2.msra.mxu0 0.0
    %323 = vmatprep.subr.mxu0 0.0
    %324 = vmatpush2.msra.mxu0 0.0
    %325 = vmatprep.subr.mxu0 0.0
    %326 = vmatpush2.msra.mxu0 0.0
    %327 = vmatprep.subr.mxu0 0.0
    %328 = vmatpush2.msra.mxu0 0.0
    %329 = vmatprep.subr.mxu0 0.0
    %330 = vmatpush2.msra.mxu0 0.0
    %331 = vmatprep.subr.mxu0 0.0
    %332 = vmatpush2.msra.mxu0 0.0
    %333 = vmatprep.subr.mxu0 0.0
    %334 = vmatpush2.msra.mxu0 0.0
    %335 = vmatprep.subr.mxu0 0.0
    %336 = vmatpush2.msra.mxu0 0.0
    %337 = vmatprep.subr.mxu0 0.0
    %338 = vmatpush2.msra.mxu0 0.0
    %339 = vmatprep.subr.mxu0 0.0
    %340 = vmatpush2.msra.mxu0 0.0
    %341 = vmatprep.subr.mxu0 0.0
    %342 = vmatpush2.msra.mxu0 0.0
    %343 = vmatprep.subr.mxu0 0.0
    %344 = vmatpush2.msra.mxu0 0.0
    %345 = vmatprep.subr.mxu0 0.0
    %346 = vmatpush2.msra.mxu0 0.0
    %347 = vmatprep.subr.mxu0 0.0
    %348 = vmatpush2.msra.mxu0 0.0
    %349 = vmatprep.subr.mxu0 0.0
    %350 = vmatpush2.msra.mxu0 0.0
    %351 = vmatprep.subr.mxu0 0.0
    %352 = vmatpush2.msra.mxu0 0.0
    %353 = vmatprep.mubr.f32.mxu0 0.0
    %354 = vmatmul.mubr.f32.gmra.mxu0 %v224
    %v355 = vpop.f32.mrf.mxu0
    %v356 = vadd.f32 0.0, %v355
    %v357 = vpop.f32.mrf.mxu0
    %v358 = vadd.f32 0.0, %v357
    %359 = vdwg.mxu0
    %360 = vmatprep.subr.mxu0 %v288
    %361 = vmatpush1.msra.mxu0 %v287
    %362 = vmatprep.subr.mxu0 %v284
    %363 = vmatpush1.msra.mxu0 %v283
    %364 = vmatprep.subr.mxu0 %v280
    %365 = vmatpush1.msra.mxu0 %v279
    %366 = vmatprep.subr.mxu0 %v276
    %367 = vmatpush1.msra.mxu0 %v275
    %368 = vmatprep.subr.mxu0 %v272
    %369 = vmatpush1.msra.mxu0 %v271
    %370 = vmatprep.subr.mxu0 %v268
    %371 = vmatpush1.msra.mxu0 %v267
    %372 = vmatprep.subr.mxu0 %v264
    %373 = vmatpush1.msra.mxu0 %v263
    %374 = vmatprep.subr.mxu0 %v260
    %375 = vmatpush1.msra.mxu0 %v259
    %376 = vmatprep.subr.mxu0 %v256
    %377 = vmatpush1.msra.mxu0 %v255
    %378 = vmatprep.subr.mxu0 %v252
    %379 = vmatpush1.msra.mxu0 %v251
    %380 = vmatprep.subr.mxu0 %v248
    %381 = vmatpush1.msra.mxu0 %v247
    %382 = vmatprep.subr.mxu0 %v244
    %383 = vmatpush1.msra.mxu0 %v243
    %384 = vmatprep.subr.mxu0 %v240
    %385 = vmatpush1.msra.mxu0 %v239
    %386 = vmatprep.subr.mxu0 %v236
    %387 = vmatpush1.msra.mxu0 %v235
    %388 = vmatprep.subr.mxu0 %v232
    %389 = vmatpush1.msra.mxu0 %v231
    %390 = vmatprep.subr.mxu0 %v228
    %391 = vmatpush1.msra.mxu0 %v227
    %392 = vmatprep.subr.mxu0 0.0
    %393 = vmatpush2.msra.mxu0 0.0
    %394 = vmatprep.subr.mxu0 0.0
    %395 = vmatpush2.msra.mxu0 0.0
    %396 = vmatprep.subr.mxu0 0.0
    %397 = vmatpush2.msra.mxu0 0.0
    %398 = vmatprep.subr.mxu0 0.0
    %399 = vmatpush2.msra.mxu0 0.0
    %400 = vmatprep.subr.mxu0 0.0
    %401 = vmatpush2.msra.mxu0 0.0
    %402 = vmatprep.subr.mxu0 0.0
    %403 = vmatpush2.msra.mxu0 0.0
    %404 = vmatprep.subr.mxu0 0.0
    %405 = vmatpush2.msra.mxu0 0.0
    %406 = vmatprep.subr.mxu0 0.0
    %407 = vmatpush2.msra.mxu0 0.0
    %408 = vmatprep.subr.mxu0 0.0
    %409 = vmatpush2.msra.mxu0 0.0
    %410 = vmatprep.subr.mxu0 0.0
    %411 = vmatpush2.msra.mxu0 0.0
    %412 = vmatprep.subr.mxu0 0.0
    %413 = vmatpush2.msra.mxu0 0.0
    %414 = vmatprep.subr.mxu0 0.0
    %415 = vmatpush2.msra.mxu0 0.0
    %416 = vmatprep.subr.mxu0 0.0
    %417 = vmatpush2.msra.mxu0 0.0
    %418 = vmatprep.subr.mxu0 0.0
    %419 = vmatpush2.msra.mxu0 0.0
    %420 = vmatprep.subr.mxu0 0.0
    %421 = vmatpush2.msra.mxu0 0.0
    %422 = vmatprep.subr.mxu0 0.0
    %423 = vmatpush2.msra.mxu0 0.0
    %424 = vmatprep.mubr.f32.mxu0 0.0
    %425 = vmatmul.mubr.f32.gmra.mxu0 %v224
    %v426 = vpop.f32.mrf.mxu0
    %v427 = vadd.f32 0.0, %v426
    %v428 = vpop.f32.mrf.mxu0
    %v429 = vadd.f32 0.0, %v428
    %430 = vdwg.mxu0
    %v431 = vld [vmem:[#allocation7] sm:$0xff]
    %v432 = vld [vmem:[#allocation7 + $0x8] sm:$0xff]
    %v433 = vld [vmem:[%s3] sm:$0x3]
    %v435 = vlaneseq
    %v436 = vshrl.u32 %v435, 7
    %v437 = vsub.s32 0, %v436
    %v438 = vrot.slane %v433, %v437
    %v439 = vlaneseq
    %v440 = vshrl.u32 %v439, 7
    %v441 = vsub.s32 1, %v440
    %v442 = vrot.slane %v433, %v441
    %vm445 = vcmask 64512
    %v446 = vsel %vm445, %v70, 0
    %448 = vmatprep.subr.mxu0 0.0
    %449 = vmatpush1.msra.mxu0 0.0
    %450 = vmatprep.subr.mxu0 0.0
    %451 = vmatpush1.msra.mxu0 0.0
    %452 = vmatprep.subr.mxu0 0.0
    %453 = vmatpush1.msra.mxu0 0.0
    %454 = vmatprep.subr.mxu0 0.0
    %455 = vmatpush1.msra.mxu0 0.0
    %456 = vmatprep.subr.mxu0 0.0
    %457 = vmatpush1.msra.mxu0 0.0
    %458 = vmatprep.subr.mxu0 0.0
    %459 = vmatpush1.msra.mxu0 0.0
    %460 = vmatprep.subr.mxu0 0.0
    %461 = vmatpush1.msra.mxu0 0.0
    %462 = vmatprep.subr.mxu0 0.0
    %463 = vmatpush1.msra.mxu0 0.0
    %464 = vmatprep.subr.mxu0 0.0
    %465 = vmatpush1.msra.mxu0 0.0
    %466 = vmatprep.subr.mxu0 0.0
    %467 = vmatpush1.msra.mxu0 0.0
    %468 = vmatprep.subr.mxu0 0.0
    %469 = vmatpush1.msra.mxu0 0.0
    %470 = vmatprep.subr.mxu0 0.0
    %471 = vmatpush1.msra.mxu0 0.0
    %472 = vmatprep.subr.mxu0 0.0
    %473 = vmatpush1.msra.mxu0 0.0
    %474 = vmatprep.subr.mxu0 0.0
    %475 = vmatpush1.msra.mxu0 0.0
    %476 = vmatprep.subr.mxu0 0.0
    %477 = vmatpush1.msra.mxu0 0.0
    %478 = vmatprep.subr.mxu0 %v432
    %479 = vmatpush1.msra.mxu0 %v431
    %480 = vmatprep.subr.mxu0 0.0
    %481 = vmatpush2.msra.mxu0 0.0
    %482 = vmatprep.subr.mxu0 0.0
    %483 = vmatpush2.msra.mxu0 0.0
    %484 = vmatprep.subr.mxu0 0.0
    %485 = vmatpush2.msra.mxu0 0.0
    %486 = vmatprep.subr.mxu0 0.0
    %487 = vmatpush2.msra.mxu0 0.0
    %488 = vmatprep.subr.mxu0 0.0
    %489 = vmatpush2.msra.mxu0 0.0
    %490 = vmatprep.subr.mxu0 0.0
    %491 = vmatpush2.msra.mxu0 0.0
    %492 = vmatprep.subr.mxu0 0.0
    %493 = vmatpush2.msra.mxu0 0.0
    %494 = vmatprep.subr.mxu0 0.0
    %495 = vmatpush2.msra.mxu0 0.0
    %496 = vmatprep.subr.mxu0 0.0
    %497 = vmatpush2.msra.mxu0 0.0
    %498 = vmatprep.subr.mxu0 0.0
    %499 = vmatpush2.msra.mxu0 0.0
    %500 = vmatprep.subr.mxu0 0.0
    %501 = vmatpush2.msra.mxu0 0.0
    %502 = vmatprep.subr.mxu0 0.0
    %503 = vmatpush2.msra.mxu0 0.0
    %504 = vmatprep.subr.mxu0 0.0
    %505 = vmatpush2.msra.mxu0 0.0
    %506 = vmatprep.subr.mxu0 0.0
    %507 = vmatpush2.msra.mxu0 0.0
    %508 = vmatprep.subr.mxu0 0.0
    %509 = vmatpush2.msra.mxu0 0.0
    %510 = vmatprep.subr.mxu0 0.0
    %511 = vmatpush2.msra.mxu0 0.0
    %512 = vmatprep.mubr.f32.mxu0 0.0
    %513 = vmatmul.mubr.f32.gmra.mxu0 %v446
    %v514 = vpop.f32.mrf.mxu0
    %v515 = vadd.f32 %v438, %v514
    %v516 = vpop.f32.mrf.mxu0
    %v517 = vadd.f32 %v442, %v516
    %518 = vdwg.mxu0
    %v519 = vmul.f32 %v515, %v356
    %v520 = vmul.f32 %v517, %v358
    %v521 = vadd.f32 %v519, %v427
    %v522 = vadd.f32 %v520, %v429
    %523 = vst [vmem:[#allocation10] sm:$0xff] %v521
    %524 = vst [vmem:[#allocation10 + $0x8] sm:$0xff] %v522
    // Predicated region
    $region38: #{tpu_custom_call.1} parent=1 // pred_check
      _
    $region39: #{tpu_custom_call.1} parent=1 // pred_check_branch
      %526 = sbr.rel (0) target = $region41
    $region40: #{tpu_custom_call.1} parent=1 // pred_region
      %s528 = ssub.s32 256, 256
      %529 = vsyncadd [#allocation4], %s528
      %s531 = sshll.u32 [#allocation10], 4
      %s532 = int_to_ptr.vmem [resolvable:$true] %s531
      %534 = dma.vmem_to_hbm [thread:$0]  %s532, 256, %s5, [#allocation4]
    $region41: #{tpu_custom_call.1} parent=1 // pred_fallthru
      _
    // Predicated region
    $region42: #{tpu_custom_call.1} parent=1 // pred_check
      _
    $region43: #{tpu_custom_call.1} parent=1 // pred_check_branch
      %536 = sbr.rel (0) target = $region45
    $region44: #{tpu_custom_call.1} parent=1 // pred_region
      %537 = dma.done [#allocation4], 256
    $region45: #{tpu_custom_call.1} parent=1 // pred_fallthru
      _
    %538 = vsyncpa [#allocation3], 1
    %539 = vsyncpa [#allocation6], 1
    %540 = vsyncpa [#allocation9], 1
    %541 = vsyncpa [#allocation4], 1

</llo_original>
